<compile_context>
chip_gen: v7x
topology: tpu7x:2x2x1
jax: 0.10.0
libtpu: 0.0.40
codegen_flags: <defaults>
</compile_context>

<pallas_src>
import functools

import jax
import jax.numpy as jnp
from jax.experimental import pallas as pl
from jax.experimental.pallas import tpu as pltpu


def _round_up(x: int, m: int) -> int:
    return ((x + m - 1) // m) * m


def _vmem_limit_bytes() -> int:
    """Generation-aware VMEM budget: ~half of physical VMEM, >=32 MiB."""
    try:
        cap = pltpu.get_tpu_info().vmem_capacity_bytes
        return max(32 * 1024 * 1024, int(cap) // 2)
    except Exception:
        return 64 * 1024 * 1024  # safe default for v5e/v6e


def _mlp_kernel(h_ref, w1_ref, b1_ref, w2_ref, b2_ref, out_ref, *, compute_dtype):
    # h_ref: (tile_n, in_feats)      w1_ref: (in_feats, hidden_p)  b1_ref: (1, hidden_p)
    # w2_ref: (hidden_p, out_feats)  b2_ref: (1, out_feats)        out_ref: (tile_n, out_feats)
    h = h_ref[...].astype(compute_dtype)

    # linear1 (zero-concat folded into the pre-sliced weight) + ReLU, f32 accumulate.
    z1 = jnp.dot(h, w1_ref[...], preferred_element_type=jnp.float32) + b1_ref[...]
    a1 = jnp.maximum(z1, 0.0)                                   # (tile_n, hidden_p) f32

    # linear2 (second zero-concat likewise folded away).  Padded hidden lanes are
    # exactly zero and hit zero rows of w2 -> bit-exact.
    z2 = jnp.dot(a1.astype(compute_dtype), w2_ref[...],
                 preferred_element_type=jnp.float32) + b2_ref[...]
    out_ref[...] = z2.astype(out_ref.dtype)


def prepare_params(w1, b1, w2, b2, *, use_bf16: bool = False):
    """One-time weight repacking (do NOT call per forward step).

    w1: (2*in_feats, hidden)  stored pre-transposed (fan_in, fan_out)
        (NOTE: PyTorch nn.Linear stores (out, in) -- transpose before calling).
    b1: (hidden,) or (1, hidden)
    w2: (2*hidden, out_feats) stored pre-transposed
    b2: (out_feats,) or (1, out_feats)
    """
    fan_in1, hidden = w1.shape
    in_feats = fan_in1 // 2
    fan_in2, out_feats = w2.shape
    assert fan_in1 == 2 * in_feats and fan_in2 == 2 * hidden

    wdtype = jnp.bfloat16 if use_bf16 else w1.dtype

    # Fold cat([x, zeros]) @ W -> x @ W[:fan_in_active]  (bit-exact).
    # Pad only the *hidden* dim to 128 lanes (internal to the kernel, free).
    hidden_p = _round_up(hidden, 128)
    w1p = jnp.pad(w1[:in_feats, :], ((0, 0), (0, hidden_p - hidden))).astype(wdtype)
    b1p = jnp.pad(b1.reshape(1, hidden).astype(jnp.float32),
                  ((0, 0), (0, hidden_p - hidden)))
    w2p = jnp.pad(w2[:hidden, :], ((0, hidden_p - hidden), (0, 0))).astype(wdtype)
    b2p = b2.reshape(1, out_feats).astype(jnp.float32)
    return (w1p, b1p, w2p, b2p)


def mlp_double_zeros(h, params, *, tile_n: int = 512, use_bf16: bool = False):
    """Forward pass of MLP_doubel_zeros.  `params` from prepare_params()."""
    w1p, b1p, w2p, b2p = params
    N, in_feats = h.shape
    assert w1p.shape[0] == in_feats
    hidden_p = w1p.shape[1]
    out_feats = w2p.shape[1]
    dtype = h.dtype
    compute_dtype = jnp.bfloat16 if use_bf16 else jnp.float32

    # Row tile: multiple of 8 sublanes; cap at ceil(N/2) so the parallel batch
    # axis has >=2 tiles (both v7x TensorCores busy) whenever N > 8.
    half = _round_up(pl.cdiv(N, 2), 8)
    tile = max(8, min(tile_n, half))
    grid = (pl.cdiv(N, tile),)   # ragged final tile handled by Pallas masking

    kernel = functools.partial(_mlp_kernel, compute_dtype=compute_dtype)

    out = pl.pallas_call(
        kernel,
        out_shape=jax.ShapeDtypeStruct((N, out_feats), dtype),
        grid_spec=pltpu.PrefetchScalarGridSpec(
            num_scalar_prefetch=0,
            grid=grid,
            in_specs=[
                pl.BlockSpec((tile, in_feats), lambda i: (i, 0)),       # h: row-tiled
                pl.BlockSpec((in_feats, hidden_p), lambda i: (0, 0)),   # w1: resident
                pl.BlockSpec((1, hidden_p), lambda i: (0, 0)),          # b1: resident
                pl.BlockSpec((hidden_p, out_feats), lambda i: (0, 0)),  # w2: resident
                pl.BlockSpec((1, out_feats), lambda i: (0, 0)),         # b2: resident
            ],
            out_specs=pl.BlockSpec((tile, out_feats), lambda i: (i, 0)),
        ),
        compiler_params=pltpu.CompilerParams(
            dimension_semantics=("parallel",),
            vmem_limit_bytes=_vmem_limit_bytes(),
        ),
    )(h, w1p, b1p, w2p, b2p)
    return out


def _reference(h, w1, b1, w2, b2):
    """Pure-JAX replica of the exact PyTorch forward."""
    h_cat = jnp.concatenate([h, jnp.zeros_like(h)], axis=1)
    a1 = jax.nn.relu(h_cat @ w1 + b1.reshape(1, -1))
    a1_cat = jnp.concatenate([a1, jnp.zeros_like(a1)], axis=1)
    return a1_cat @ w2 + b2.reshape(1, -1)


if __name__ == "__main__":
    in_feats = 16
    hidden = 32
    out_feats = 8

    key = jax.random.PRNGKey(0)
    k_h, k_h2, k_w1, k_b1, k_w2, k_b2 = jax.random.split(key, 6)

    # nn.Linear params stored pre-transposed as (fan_in, fan_out).
    w1 = 0.1 * jax.random.normal(k_w1, (2 * in_feats, hidden), dtype=jnp.float32)
    b1 = 0.1 * jax.random.normal(k_b1, (1, hidden), dtype=jnp.float32)
    w2 = 0.1 * jax.random.normal(k_w2, (2 * hidden, out_feats), dtype=jnp.float32)
    b2 = 0.1 * jax.random.normal(k_b2, (1, out_feats), dtype=jnp.float32)

    # One-time weight repacking (hoisted out of the per-call path).
    params = prepare_params(w1, b1, w2, b2, use_bf16=False)

    ok = True

    # Case 1: N multiple of the sublane tile.
    N1 = 8
    h1 = jax.random.normal(k_h, (N1, in_feats), dtype=jnp.float32)
    out1 = jax.block_until_ready(mlp_double_zeros(h1, params))
    ref1 = _reference(h1, w1, b1, w2, b2)
    ok &= out1.shape == (N1, out_feats)
    ok &= bool(jnp.allclose(out1, ref1, atol=1e-5, rtol=1e-5))

    # Case 2: ragged N (exercises the masked final row-tile, no wrapper padding).
    N2 = 13
    h2 = jax.random.normal(k_h2, (N2, in_feats), dtype=jnp.float32)
    out2 = jax.block_until_ready(mlp_double_zeros(h2, params))
    ref2 = _reference(h2, w1, b1, w2, b2)
    ok &= out2.shape == (N2, out_feats)
    ok &= bool(jnp.allclose(out2, ref2, atol=1e-5, rtol=1e-5))

    assert ok
    print("KERNEL_OK")
</pallas_src>

<mosaic_0001>
module attributes {stable_mosaic.version = 11 : i64} {
  func.func @_mlp_kernel(%arg0: i32, %arg1: memref<8x16xf32, #tpu.memory_space<vmem>>, %arg2: memref<16x128xf32, #tpu.memory_space<vmem>>, %arg3: memref<1x128xf32, #tpu.memory_space<vmem>>, %arg4: memref<128x8xf32, #tpu.memory_space<vmem>>, %arg5: memref<1x8xf32, #tpu.memory_space<vmem>>, %arg6: memref<8x8xf32, #tpu.memory_space<vmem>>) attributes {dimension_semantics = [#tpu.dimension_semantics<parallel>], iteration_bounds = array<i64: 1>, scalar_prefetch = 0 : i64, scratch_operands = 0 : i64, tpu.core_type = #tpu.core_type<tc>, window_params = [{transform_indices = @transform_0, window_bounds = array<i64: 8, 16>}, {pipeline_mode = #tpu.pipeline_mode<synchronous>, transform_indices = @transform_1, window_bounds = array<i64: 16, 128>}, {pipeline_mode = #tpu.pipeline_mode<synchronous>, transform_indices = @transform_2, window_bounds = array<i64: 1, 128>}, {pipeline_mode = #tpu.pipeline_mode<synchronous>, transform_indices = @transform_3, window_bounds = array<i64: 128, 8>}, {pipeline_mode = #tpu.pipeline_mode<synchronous>, transform_indices = @transform_4, window_bounds = array<i64: 1, 8>}, {transform_indices = @transform_5, window_bounds = array<i64: 8, 8>}]} {
    %c0 = arith.constant 0 : index
    %c0_0 = arith.constant 0 : index
    %0 = vector.load %arg1[%c0, %c0_0] : memref<8x16xf32, #tpu.memory_space<vmem>>, vector<8x16xf32>
    %c0_1 = arith.constant 0 : index
    %c0_2 = arith.constant 0 : index
    %1 = vector.load %arg2[%c0_1, %c0_2] : memref<16x128xf32, #tpu.memory_space<vmem>>, vector<16x128xf32>
    %cst = arith.constant dense<0.000000e+00> : vector<8x128xf32>
    %2 = tpu.matmul %0, %1, %cst {dimension_numbers = #tpu.dot_dimension_numbers<[1], [0], [0], [1], [0, 0, 1, 1], [], []>} : vector<8x16xf32>, vector<16x128xf32>, vector<8x128xf32> -> vector<8x128xf32>
    %c0_3 = arith.constant 0 : index
    %c0_4 = arith.constant 0 : index
    %3 = vector.load %arg3[%c0_3, %c0_4] : memref<1x128xf32, #tpu.memory_space<vmem>>, vector<1x128xf32>
    %4 = vector.broadcast %3 : vector<1x128xf32> to vector<8x128xf32>
    %5 = arith.addf %2, %4 : vector<8x128xf32>
    %cst_5 = arith.constant 0.000000e+00 : f32
    %6 = vector.broadcast %cst_5 : f32 to vector<8x128xf32>
    %7 = arith.maximumf %5, %6 : vector<8x128xf32>
    %c0_6 = arith.constant 0 : index
    %c0_7 = arith.constant 0 : index
    %8 = vector.load %arg4[%c0_6, %c0_7] : memref<128x8xf32, #tpu.memory_space<vmem>>, vector<128x8xf32>
    %cst_8 = arith.constant dense<0.000000e+00> : vector<8x8xf32>
    %9 = tpu.matmul %7, %8, %cst_8 {dimension_numbers = #tpu.dot_dimension_numbers<[1], [0], [0], [1], [0, 0, 1, 1], [], []>} : vector<8x128xf32>, vector<128x8xf32>, vector<8x8xf32> -> vector<8x8xf32>
    %c0_9 = arith.constant 0 : index
    %c0_10 = arith.constant 0 : index
    %10 = vector.load %arg5[%c0_9, %c0_10] : memref<1x8xf32, #tpu.memory_space<vmem>>, vector<1x8xf32>
    %11 = vector.broadcast %10 : vector<1x8xf32> to vector<8x8xf32>
    %12 = arith.addf %9, %11 : vector<8x8xf32>
    %c0_11 = arith.constant 0 : index
    %c0_12 = arith.constant 0 : index
    %13 = vector.load %arg6[%c0_11, %c0_12] : memref<8x8xf32, #tpu.memory_space<vmem>>, vector<8x8xf32>
    tpu.vector_store %arg6[%c0_11, %c0_12], %12 {strides = array<i32>} : memref<8x8xf32, #tpu.memory_space<vmem>>, vector<8x8xf32>,
    return
  }
  func.func @transform_0(%arg0: i32) -> (i32, i32) {
    %c0_i32 = arith.constant 0 : i32
    %c0_i32_0 = arith.constant 0 : i32
    return %arg0, %c0_i32 : i32, i32
  }
  func.func @transform_1(%arg0: i32) -> (i32, i32) {
    %c0_i32 = arith.constant 0 : i32
    %c0_i32_0 = arith.constant 0 : i32
    %c0_i32_1 = arith.constant 0 : i32
    return %c0_i32, %c0_i32_0 : i32, i32
  }
  func.func @transform_2(%arg0: i32) -> (i32, i32) {
    %c0_i32 = arith.constant 0 : i32
    %c0_i32_0 = arith.constant 0 : i32
    %c0_i32_1 = arith.constant 0 : i32
    return %c0_i32, %c0_i32_0 : i32, i32
  }
  func.func @transform_3(%arg0: i32) -> (i32, i32) {
    %c0_i32 = arith.constant 0 : i32
    %c0_i32_0 = arith.constant 0 : i32
    %c0_i32_1 = arith.constant 0 : i32
    return %c0_i32, %c0_i32_0 : i32, i32
  }
  func.func @transform_4(%arg0: i32) -> (i32, i32) {
    %c0_i32 = arith.constant 0 : i32
    %c0_i32_0 = arith.constant 0 : i32
    %c0_i32_1 = arith.constant 0 : i32
    return %c0_i32, %c0_i32_0 : i32, i32
  }
  func.func @transform_5(%arg0: i32) -> (i32, i32) {
    %c0_i32 = arith.constant 0 : i32
    %c0_i32_0 = arith.constant 0 : i32
    return %arg0, %c0_i32 : i32, i32
  }
}

</mosaic_0001>

<llo_original>
// kernel: tpu_custom_call.1
$region0: #{tpu_custom_call.1}
  #allocation0 [shape = 'u32[]', space=smem, size = 0x4, offset = 0x4, fixed_abs, tag = 'smem constant byte address 0x4 - core index']
  #allocation1 [shape = 'u32[144,128]{1,0:T(1,128)}', space=vmem, size = 0x12000, scoped, tag = 'internal scratch']
  %s0 = inlined_call_operand.hbm [shape: f32[8,16], index: 0, kind: input, shape index: {}]
  %s1 = inlined_call_operand.hbm [shape: f32[16,128], index: 1, kind: input, shape index: {}]
  %s2 = inlined_call_operand.hbm [shape: f32[1,128], index: 2, kind: input, shape index: {}]
  %s3 = inlined_call_operand.hbm [shape: f32[128,8], index: 3, kind: input, shape index: {}]
  %s4 = inlined_call_operand.hbm [shape: f32[1,8], index: 4, kind: input, shape index: {}]
  %s5 = inlined_call_operand.hbm [shape: f32[8,8], index: 5, kind: output, shape index: {}]
  %s6 = sld [smem:[#allocation0]]
  $region50: #{tpu_custom_call.1} parent=0
    _
  %s8 = ssub.s32 1, %s6
  %s9 = scalar_select 0, %s8, %s6
  $region1: #{tpu_custom_call.1} parent=0
    #allocation2 [shape = 'u8[4096]{0}', space=vmem, size = 0x1000, scoped, tag = 'input window, operand 0, single buffered']
    #allocation3 [shape = 's32[1]{0}', space=sflag, size = 0x4, scoped, tag = 'scoped memory for tpu_custom_call.1']
    #allocation4 [shape = 's32[1]{0}', space=sflag, size = 0x4, scoped, tag = 'scoped memory for tpu_custom_call.1']
    #allocation5 [shape = 'u8[8192]{0}', space=vmem, size = 0x2000, scoped, tag = 'input window, operand 1, single buffered']
    #allocation6 [shape = 's32[1]{0}', space=sflag, size = 0x4, scoped, tag = 'scoped memory for tpu_custom_call.1']
    #allocation7 [shape = 'u8[512]{0}', space=vmem, size = 0x400, scoped, tag = 'input window, operand 2, single buffered']
    #allocation8 [shape = 'u8[65536]{0}', space=vmem, size = 0x10000, scoped, tag = 'input window, operand 3, single buffered']
    #allocation9 [shape = 's32[1]{0}', space=sflag, size = 0x4, scoped, tag = 'scoped memory for tpu_custom_call.1']
    #allocation10 [shape = 'u8[512]{0}', space=vmem, size = 0x400, scoped, tag = 'input window, operand 4, single buffered']
    #allocation11 [shape = 'u8[4096]{0}', space=vmem, size = 0x1000, scoped, tag = 'output window, operand 0, single buffered']
    %10 = vsyncpa [#allocation3], 0
    %11 = vsyncpa [#allocation6], 0
    %12 = vsyncpa [#allocation9], 0
    %13 = vsyncpa [#allocation4], 0
    // Predicated region
    $region2: #{tpu_custom_call.1} parent=1 // pred_check
      _
    $region3: #{tpu_custom_call.1} parent=1 // pred_check_branch
      %15 = sbr.rel (0) target = $region5
    $region4: #{tpu_custom_call.1} parent=1 // pred_region
      %s17 = ssub.s32 128, 128
      %18 = vsyncadd [#allocation3], %s17
      %s20 = sshll.u32 [#allocation2], 4
      %s21 = int_to_ptr.vmem [resolvable:$true] %s20
      %23 = dma.hbm_to_vmem [thread:$0]  %s0, 128, %s21, [#allocation3]
    $region5: #{tpu_custom_call.1} parent=1 // pred_fallthru
      _
    // Predicated region
    $region6: #{tpu_custom_call.1} parent=1 // pred_check
      _
    $region7: #{tpu_custom_call.1} parent=1 // pred_check_branch
      %25 = sbr.rel (0) target = $region9
    $region8: #{tpu_custom_call.1} parent=1 // pred_region
      %s27 = ssub.s32 256, 256
      %28 = vsyncadd [#allocation6], %s27
      %s29 = sshll.u32 [#allocation5], 4
      %s30 = int_to_ptr.vmem [resolvable:$true] %s29
      %35 = dma.hbm_to_vmem [thread:$0]  %s1, 256, %s30, [#allocation6], 128, 128, 8
    $region9: #{tpu_custom_call.1} parent=1 // pred_fallthru
      _
    // Predicated region
    $region10: #{tpu_custom_call.1} parent=1 // pred_check
      _
    $region11: #{tpu_custom_call.1} parent=1 // pred_check_branch
      %37 = sbr.rel (0) target = $region13
    $region12: #{tpu_custom_call.1} parent=1 // pred_region
      %s39 = ssub.s32 16, 16
      %40 = vsyncadd [#allocation6], %s39
      %s42 = sshll.u32 [#allocation7], 4
      %s43 = int_to_ptr.vmem [resolvable:$true] %s42
      %45 = dma.hbm_to_vmem [thread:$0]  %s2, 16, %s43, [#allocation6]
    $region13: #{tpu_custom_call.1} parent=1 // pred_fallthru
      _
    // Predicated region
    $region14: #{tpu_custom_call.1} parent=1 // pred_check
      _
    $region15: #{tpu_custom_call.1} parent=1 // pred_check_branch
      %47 = sbr.rel (0) target = $region17
    $region16: #{tpu_custom_call.1} parent=1 // pred_region
      %s49 = ssub.s32 2048, 2048
      %50 = vsyncadd [#allocation9], %s49
      %s51 = sshll.u32 [#allocation8], 4
      %s52 = int_to_ptr.vmem [resolvable:$true] %s51
      %57 = dma.hbm_to_vmem [thread:$0]  %s3, 2048, %s52, [#allocation9], 128, 128, 8
    $region17: #{tpu_custom_call.1} parent=1 // pred_fallthru
      _
    // Predicated region
    $region18: #{tpu_custom_call.1} parent=1 // pred_check
      _
    $region19: #{tpu_custom_call.1} parent=1 // pred_check_branch
      %59 = sbr.rel (0) target = $region21
    $region20: #{tpu_custom_call.1} parent=1 // pred_region
      %s61 = ssub.s32 16, 16
      %62 = vsyncadd [#allocation9], %s61
      %s64 = sshll.u32 [#allocation10], 4
      %s65 = int_to_ptr.vmem [resolvable:$true] %s64
      %67 = dma.hbm_to_vmem [thread:$0]  %s4, 16, %s65, [#allocation9]
    $region21: #{tpu_custom_call.1} parent=1 // pred_fallthru
      _
    // Predicated region
    $region22: #{tpu_custom_call.1} parent=1 // pred_check
      _
    $region23: #{tpu_custom_call.1} parent=1 // pred_check_branch
      %69 = sbr.rel (0) target = $region25
    $region24: #{tpu_custom_call.1} parent=1 // pred_region
      %70 = dma.done [#allocation3], 128
    $region25: #{tpu_custom_call.1} parent=1 // pred_fallthru
      _
    // Predicated region
    $region26: #{tpu_custom_call.1} parent=1 // pred_check
      _
    $region27: #{tpu_custom_call.1} parent=1 // pred_check_branch
      %72 = sbr.rel (0) target = $region29
    $region28: #{tpu_custom_call.1} parent=1 // pred_region
      %73 = dma.done [#allocation6], 256
    $region29: #{tpu_custom_call.1} parent=1 // pred_fallthru
      _
    // Predicated region
    $region30: #{tpu_custom_call.1} parent=1 // pred_check
      _
    $region31: #{tpu_custom_call.1} parent=1 // pred_check_branch
      %75 = sbr.rel (0) target = $region33
    $region32: #{tpu_custom_call.1} parent=1 // pred_region
      %76 = dma.done [#allocation6], 16
    $region33: #{tpu_custom_call.1} parent=1 // pred_fallthru
      _
    // Predicated region
    $region34: #{tpu_custom_call.1} parent=1 // pred_check
      _
    $region35: #{tpu_custom_call.1} parent=1 // pred_check_branch
      %78 = sbr.rel (0) target = $region37
    $region36: #{tpu_custom_call.1} parent=1 // pred_region
      %79 = dma.done [#allocation9], 2048
    $region37: #{tpu_custom_call.1} parent=1 // pred_fallthru
      _
    // Predicated region
    $region38: #{tpu_custom_call.1} parent=1 // pred_check
      _
    $region39: #{tpu_custom_call.1} parent=1 // pred_check_branch
      %81 = sbr.rel (0) target = $region41
    $region40: #{tpu_custom_call.1} parent=1 // pred_region
      %82 = dma.done [#allocation9], 16
    $region41: #{tpu_custom_call.1} parent=1 // pred_fallthru
      _
    %v83 = vld [vmem:[#allocation2] sm:$0xff]
    %v84 = vld [vmem:[#allocation5] sm:$0xff]
    %v85 = vld [vmem:[#allocation5 + $0x8] sm:$0xff]
    %v86 = vld [vmem:[#allocation7] sm:$0x1]
    %v88 = vlaneseq
    %v89 = vshrl.u32 %v88, 7
    %v90 = vsub.s32 0, %v89
    %v91 = vrot.slane %v86, %v90
    %vm93 = vcmask 130048
    %v95 = vsel %vm93, %v83, 0
    %97 = vmatprep.subr.mxu0 0.0
    %98 = vmatpush1.msra.mxu0 %v84
    %99 = vmatprep.subr.mxu0 0.0
    %100 = vmatpush1.msra.mxu0 %v85
    %101 = vmatprep.subr.mxu0 0.0
    %102 = vmatpush1.msra.mxu0 0.0
    %103 = vmatprep.subr.mxu0 0.0
    %104 = vmatpush1.msra.mxu0 0.0
    %105 = vmatprep.subr.mxu0 0.0
    %106 = vmatpush1.msra.mxu0 0.0
    %107 = vmatprep.subr.mxu0 0.0
    %108 = vmatpush1.msra.mxu0 0.0
    %109 = vmatprep.subr.mxu0 0.0
    %110 = vmatpush1.msra.mxu0 0.0
    %111 = vmatprep.subr.mxu0 0.0
    %112 = vmatpush1.msra.mxu0 0.0
    %113 = vmatprep.subr.mxu0 0.0
    %114 = vmatpush1.msra.mxu0 0.0
    %115 = vmatprep.subr.mxu0 0.0
    %116 = vmatpush1.msra.mxu0 0.0
    %117 = vmatprep.subr.mxu0 0.0
    %118 = vmatpush1.msra.mxu0 0.0
    %119 = vmatprep.subr.mxu0 0.0
    %120 = vmatpush1.msra.mxu0 0.0
    %121 = vmatprep.subr.mxu0 0.0
    %122 = vmatpush1.msra.mxu0 0.0
    %123 = vmatprep.subr.mxu0 0.0
    %124 = vmatpush1.msra.mxu0 0.0
    %125 = vmatprep.subr.mxu0 0.0
    %126 = vmatpush1.msra.mxu0 0.0
    %127 = vmatprep.subr.mxu0 0.0
    %128 = vmatpush1.msra.mxu0 0.0
    %129 = vmatprep.subr.mxu0 0.0
    %130 = vmatpush1.msra.mxu0 0.0
    %131 = vmatprep.subr.mxu0 0.0
    %132 = vmatpush1.msra.mxu0 0.0
    %133 = vmatprep.subr.mxu0 0.0
    %134 = vmatpush1.msra.mxu0 0.0
    %135 = vmatprep.subr.mxu0 0.0
    %136 = vmatpush1.msra.mxu0 0.0
    %137 = vmatprep.subr.mxu0 0.0
    %138 = vmatpush1.msra.mxu0 0.0
    %139 = vmatprep.subr.mxu0 0.0
    %140 = vmatpush1.msra.mxu0 0.0
    %141 = vmatprep.subr.mxu0 0.0
    %142 = vmatpush1.msra.mxu0 0.0
    %143 = vmatprep.subr.mxu0 0.0
    %144 = vmatpush1.msra.mxu0 0.0
    %145 = vmatprep.subr.mxu0 0.0
    %146 = vmatpush1.msra.mxu0 0.0
    %147 = vmatprep.subr.mxu0 0.0
    %148 = vmatpush1.msra.mxu0 0.0
    %149 = vmatprep.subr.mxu0 0.0
    %150 = vmatpush1.msra.mxu0 0.0
    %151 = vmatprep.subr.mxu0 0.0
    %152 = vmatpush1.msra.mxu0 0.0
    %153 = vmatprep.subr.mxu0 0.0
    %154 = vmatpush1.msra.mxu0 0.0
    %155 = vmatprep.subr.mxu0 0.0
    %156 = vmatpush1.msra.mxu0 0.0
    %157 = vmatprep.subr.mxu0 0.0
    %158 = vmatpush1.msra.mxu0 0.0
    %159 = vmatprep.subr.mxu0 0.0
    %160 = vmatpush1.msra.mxu0 0.0
    %161 = vmatprep.mubr.f32.mxu0 0.0
    %162 = vmatmul.mubr.f32.gmra.mrb[0].mxu0 %v95
    %v163 = vpop.f32.mrb[0].mxu0
    %v164 = vadd.f32 %v91, %v163
    %v165 = vpop.f32.mrb[0].mxu0
    %166 = vdwg.mxu0
    %v167 = vmax.f32 %v164, 0.0
    %v168 = vld [vmem:[#allocation8] sm:$0xff]
    %v169 = vld [vmem:[#allocation8 + $0x8] sm:$0xff]
    %v170 = vld [vmem:[#allocation8 + $0x10] sm:$0xff]
    %v171 = vld [vmem:[#allocation8 + $0x18] sm:$0xff]
    %v172 = vld [vmem:[#allocation8 + $0x20] sm:$0xff]
    %v173 = vld [vmem:[#allocation8 + $0x28] sm:$0xff]
    %v174 = vld [vmem:[#allocation8 + $0x30] sm:$0xff]
    %v175 = vld [vmem:[#allocation8 + $0x38] sm:$0xff]
    %v176 = vld [vmem:[#allocation8 + $0x40] sm:$0xff]
    %v177 = vld [vmem:[#allocation8 + $0x48] sm:$0xff]
    %v178 = vld [vmem:[#allocation8 + $0x50] sm:$0xff]
    %v179 = vld [vmem:[#allocation8 + $0x58] sm:$0xff]
    %v180 = vld [vmem:[#allocation8 + $0x60] sm:$0xff]
    %v181 = vld [vmem:[#allocation8 + $0x68] sm:$0xff]
    %v182 = vld [vmem:[#allocation8 + $0x70] sm:$0xff]
    %v183 = vld [vmem:[#allocation8 + $0x78] sm:$0xff]
    %v184 = vld [vmem:[#allocation10] sm:$0x1]
    %v186 = vlaneseq
    %v187 = vshrl.u32 %v186, 7
    %v188 = vsub.s32 0, %v187
    %v189 = vrot.slane %v184, %v188
    %191 = vmatprep.subr.mxu0 0.0
    %192 = vmatpush1.msra.mxu0 %v168
    %193 = vmatprep.subr.mxu0 0.0
    %194 = vmatpush1.msra.mxu0 %v169
    %195 = vmatprep.subr.mxu0 0.0
    %196 = vmatpush1.msra.mxu0 %v170
    %197 = vmatprep.subr.mxu0 0.0
    %198 = vmatpush1.msra.mxu0 %v171
    %199 = vmatprep.subr.mxu0 0.0
    %200 = vmatpush1.msra.mxu0 %v172
    %201 = vmatprep.subr.mxu0 0.0
    %202 = vmatpush1.msra.mxu0 %v173
    %203 = vmatprep.subr.mxu0 0.0
    %204 = vmatpush1.msra.mxu0 %v174
    %205 = vmatprep.subr.mxu0 0.0
    %206 = vmatpush1.msra.mxu0 %v175
    %207 = vmatprep.subr.mxu0 0.0
    %208 = vmatpush1.msra.mxu0 %v176
    %209 = vmatprep.subr.mxu0 0.0
    %210 = vmatpush1.msra.mxu0 %v177
    %211 = vmatprep.subr.mxu0 0.0
    %212 = vmatpush1.msra.mxu0 %v178
    %213 = vmatprep.subr.mxu0 0.0
    %214 = vmatpush1.msra.mxu0 %v179
    %215 = vmatprep.subr.mxu0 0.0
    %216 = vmatpush1.msra.mxu0 %v180
    %217 = vmatprep.subr.mxu0 0.0
    %218 = vmatpush1.msra.mxu0 %v181
    %219 = vmatprep.subr.mxu0 0.0
    %220 = vmatpush1.msra.mxu0 %v182
    %221 = vmatprep.subr.mxu0 0.0
    %222 = vmatpush1.msra.mxu0 %v183
    %223 = vmatprep.subr.mxu0 0.0
    %224 = vmatpush1.msra.mxu0 0.0
    %225 = vmatprep.subr.mxu0 0.0
    %226 = vmatpush1.msra.mxu0 0.0
    %227 = vmatprep.subr.mxu0 0.0
    %228 = vmatpush1.msra.mxu0 0.0
    %229 = vmatprep.subr.mxu0 0.0
    %230 = vmatpush1.msra.mxu0 0.0
    %231 = vmatprep.subr.mxu0 0.0
    %232 = vmatpush1.msra.mxu0 0.0
    %233 = vmatprep.subr.mxu0 0.0
    %234 = vmatpush1.msra.mxu0 0.0
    %235 = vmatprep.subr.mxu0 0.0
    %236 = vmatpush1.msra.mxu0 0.0
    %237 = vmatprep.subr.mxu0 0.0
    %238 = vmatpush1.msra.mxu0 0.0
    %239 = vmatprep.subr.mxu0 0.0
    %240 = vmatpush1.msra.mxu0 0.0
    %241 = vmatprep.subr.mxu0 0.0
    %242 = vmatpush1.msra.mxu0 0.0
    %243 = vmatprep.subr.mxu0 0.0
    %244 = vmatpush1.msra.mxu0 0.0
    %245 = vmatprep.subr.mxu0 0.0
    %246 = vmatpush1.msra.mxu0 0.0
    %247 = vmatprep.subr.mxu0 0.0
    %248 = vmatpush1.msra.mxu0 0.0
    %249 = vmatprep.subr.mxu0 0.0
    %250 = vmatpush1.msra.mxu0 0.0
    %251 = vmatprep.subr.mxu0 0.0
    %252 = vmatpush1.msra.mxu0 0.0
    %253 = vmatprep.subr.mxu0 0.0
    %254 = vmatpush1.msra.mxu0 0.0
    %255 = vmatprep.mubr.f32.mxu0 0.0
    %256 = vmatmul.mubr.f32.gmra.mrb[0].mxu0 %v167
    %v257 = vpop.f32.mrb[0].mxu0
    %v258 = vadd.f32 %v189, %v257
    %v259 = vpop.f32.mrb[0].mxu0
    %260 = vdwg.mxu0
    %vm261 = vcmask 64512
    %262 = vst.msk [vmem:[#allocation11] sm:$0xff] %vm261, %v258
    // Predicated region
    $region42: #{tpu_custom_call.1} parent=1 // pred_check
      _
    $region43: #{tpu_custom_call.1} parent=1 // pred_check_branch
      %264 = sbr.rel (0) target = $region45
    $region44: #{tpu_custom_call.1} parent=1 // pred_region
      %s266 = ssub.s32 128, 128
      %267 = vsyncadd [#allocation4], %s266
      %s269 = sshll.u32 [#allocation11], 4
      %s270 = int_to_ptr.vmem [resolvable:$true] %s269
      %272 = dma.vmem_to_hbm [thread:$0]  %s270, 128, %s5, [#allocation4]
    $region45: #{tpu_custom_call.1} parent=1 // pred_fallthru
      _
    // Predicated region
    $region46: #{tpu_custom_call.1} parent=1 // pred_check
      _
    $region47: #{tpu_custom_call.1} parent=1 // pred_check_branch
      %274 = sbr.rel (0) target = $region49
    $region48: #{tpu_custom_call.1} parent=1 // pred_region
      %275 = dma.done [#allocation4], 128
    $region49: #{tpu_custom_call.1} parent=1 // pred_fallthru
      _
    %276 = vsyncpa [#allocation3], 1
    %277 = vsyncpa [#allocation6], 1
    %278 = vsyncpa [#allocation9], 1
    %279 = vsyncpa [#allocation4], 1

</llo_original>
